<compile_context>
chip_gen: v6e
topology: v6e:2x2x1
jax: 0.10.0
libtpu: 0.0.40
codegen_flags: <defaults>
</compile_context>

<pallas_src>
from functools import partial

import jax
import jax.numpy as jnp
from jax.experimental import pallas as pl
from jax.experimental.pallas import tpu as pltpu


def _round_up(v, m):
    return ((v + m - 1) // m) * m


def moe_expert0_kernel(x_ref, wf_ref, bf_ref, wc_ref, bc_ref, out_ref, *,
                       num_experts, e_pad, h_pad):
    # In-kernel bf16 cast: the convert hides under the MXU instead of costing
    # a separate XLA pass over x in HBM.
    x = x_ref[...].astype(wf_ref.dtype)                          # (TN, D) bf16

    # Single fused MXU pass: columns = [gate logits | h1 | h2], each segment
    # padded to a multiple of 128 lanes -> slices below are tile-aligned views.
    acts = jnp.dot(x, wf_ref[...],
                   preferred_element_type=jnp.float32) + bf_ref[...]  # (TN, F)

    logits = acts[:, :e_pad]                                     # (TN, Ep)
    h1 = acts[:, e_pad:e_pad + h_pad]                            # (TN, Hp)
    h2 = acts[:, e_pad + h_pad:]                                 # (TN, Hp)

    # ---------------- gate: top-2 membership of expert 0 ----------------
    col = jax.lax.broadcasted_iota(jnp.int32, logits.shape, 1)
    neg = jnp.float32(-1e30)
    logits = jnp.where(col < num_experts, logits, neg)           # mask padding

    l0 = logits[:, 0:1]                                          # expert-0 logit
    others = jnp.where(col >= 1, logits, neg)                    # experts 1..E-1
    m_others = jnp.max(others, axis=-1, keepdims=True)           # best competitor
    n_greater = jnp.sum((others > l0).astype(jnp.int32),
                        axis=-1, keepdims=True)                  # strictly better
    # softmax over the two selected logits, evaluated at expert 0 (0 if not
    # selected).  Strict '>' matches torch.topk's lowest-index tie-breaking.
    gate0 = jnp.where(n_greater <= 1, jax.nn.sigmoid(l0 - m_others), 0.0)

    # ------------- expert 0 SwiGLU MLP (f32 elementwise) ---------------
    # Padded h1/h2 columns are exactly zero (zero weights + zero bias), and
    # the padded rows of wc are zero, so padding contributes nothing.
    h = h1 * (h2 * jax.nn.sigmoid(h2))                           # (TN, Hp) f32
    y = jnp.dot(h.astype(wc_ref.dtype), wc_ref[...],
                preferred_element_type=jnp.float32) + bc_ref[...]  # (TN, D)

    out_ref[...] = (gate0 * y).astype(out_ref.dtype)


def _resident_spec(shape):
    """BlockSpec for a weight that never changes across grid steps.

    Single-buffered (pl.Buffered(1)) so it is not pointlessly double-buffered;
    this halves resident-weight VMEM (most important on v7x's 64 MiB VMEM).
    """
    try:
        return pl.BlockSpec(shape, lambda i: (0, 0), pipeline_mode=pl.Buffered(1))
    except TypeError:  # older BlockSpec signature: fall back to default buffering
        return pl.BlockSpec(shape, lambda i: (0, 0))


def moe_layer_forward(x, params, *, compute_dtype=jnp.bfloat16, tile_n=1024):
    """x: (B, S, D) float32. Returns (B, S, D) float32.

    tile_n: token-tile upper bound.  At real model sizes pick a multiple of
    128 (v5e) / 256 (v6e, v7x) and size it so TN*2H*4B + single-buffered
    weights fit the per-generation VMEM budget (roughly half the TN on v7x).
    """
    B, S, D = x.shape
    N = B * S
    wg, w1, b1, w2, b2, wc, bc = params
    E = wg.shape[1]
    H = w1.shape[1]

    # ---- fused weight layout: [gate | ln_1 | ln_2], 128-aligned segments ----
    Ep = _round_up(E, 128)
    Hp = _round_up(H, 128)
    F = Ep + 2 * Hp

    wf = jnp.zeros((D, F), jnp.float32)
    wf = wf.at[:, :E].set(wg)
    wf = wf.at[:, Ep:Ep + H].set(w1)
    wf = wf.at[:, Ep + Hp:Ep + Hp + H].set(w2)
    bf = jnp.zeros((1, F), jnp.float32)
    bf = bf.at[:, Ep:Ep + H].set(b1.reshape(1, H))
    bf = bf.at[:, Ep + Hp:Ep + Hp + H].set(b2.reshape(1, H))
    wc_p = jnp.zeros((Hp, D), jnp.float32).at[:H, :].set(wc)

    # bf16 MXU operands; biases stay f32 (added to the f32 accumulator).
    wf_c = wf.astype(compute_dtype)
    wc_c = wc_p.astype(compute_dtype)
    bf_f = bf
    bc_f = bc.reshape(1, D).astype(jnp.float32)

    # ---- token tiling: >=2 grid steps when possible (v7x megacore) ----------
    if N >= 2 * tile_n:
        TN = tile_n
    else:
        TN = min(tile_n, max(8, _round_up(-(-N // 2), 8)))
    N_pad = _round_up(N, TN)

    xf = x.reshape(N, D)                       # stays f32; cast happens in-kernel
    if N_pad != N:
        xf = jnp.pad(xf, ((0, N_pad - N), (0, 0)))
    grid = (N_pad // TN,)

    # ---- generation-aware VMEM budget (never request full physical VMEM) ----
    bpe = jnp.dtype(compute_dtype).itemsize
    tile_io = 2 * 2 * (TN * D * 4)                       # x + out, double-buffered f32
    weights = (wf_c.size + wc_c.size) * bpe + (bf_f.size + bc_f.size) * 4
    interm = 4 * (TN * F * 4)                            # acts + elementwise temps (f32)
    need = tile_io + weights + interm
    try:
        vmem_cap = pltpu.get_tpu_info().vmem_capacity_bytes
    except Exception:
        vmem_cap = 64 * 1024 * 1024                      # v7x-conservative fallback
    vmem_limit = int(min(vmem_cap - 16 * 1024 * 1024,
                         max(32 * 1024 * 1024, 2 * need)))

    cost = pl.CostEstimate(
        flops=2 * N_pad * D * F + 2 * N_pad * Hp * D,
        transcendentals=N_pad * (Hp + 1),
        bytes_accessed=int(N_pad * D * 4 * 2 + weights),
    )

    kernel = partial(moe_expert0_kernel, num_experts=E, e_pad=Ep, h_pad=Hp)

    out = pl.pallas_call(
        kernel,
        out_shape=jax.ShapeDtypeStruct((N_pad, D), jnp.float32),
        grid=grid,
        in_specs=[
            pl.BlockSpec((TN, D), lambda i: (i, 0)),      # x (tiled, f32)
            _resident_spec(wf_c.shape),                   # fused [gate|ln_1|ln_2] weight
            _resident_spec(bf_f.shape),                   # fused bias (f32)
            _resident_spec(wc_c.shape),                   # c_proj weight (rows padded)
            _resident_spec(bc_f.shape),                   # c_proj bias (f32)
        ],
        out_specs=pl.BlockSpec((TN, D), lambda i: (i, 0)),
        compiler_params=pltpu.CompilerParams(
            dimension_semantics=("parallel",),
            vmem_limit_bytes=vmem_limit,
        ),
        cost_estimate=cost,
    )(xf, wf_c, bf_f, wc_c, bc_f)

    return out[:N].reshape(B, S, D)


def reference(x, params, compute_dtype=jnp.bfloat16):
    """Plain-JAX reference of the PyTorch forward (expert 0 only), mirroring
    the kernel's bf16-matmul / f32-elementwise precision."""
    wg, w1, b1, w2, b2, wc, bc = params
    B, S, D = x.shape
    xf = x.reshape(-1, D).astype(compute_dtype)
    f32 = jnp.float32

    logits = jnp.dot(xf, wg.astype(compute_dtype), preferred_element_type=f32)
    vals, idxs = jax.lax.top_k(logits, 2)
    sparse = jnp.full_like(logits, -jnp.inf)
    rows = jnp.arange(logits.shape[0])[:, None]
    sparse = sparse.at[rows, idxs].set(vals)
    gw = jax.nn.softmax(sparse, axis=-1)
    mask = (idxs == 0).any(axis=-1)

    h1 = jnp.dot(xf, w1.astype(compute_dtype), preferred_element_type=f32) + b1
    h2 = jnp.dot(xf, w2.astype(compute_dtype), preferred_element_type=f32) + b2
    h = h1 * jax.nn.silu(h2)
    y = jnp.dot(h.astype(compute_dtype), wc.astype(compute_dtype),
                preferred_element_type=f32) + bc
    out = jnp.where(mask[:, None], gw[:, 0:1] * y, 0.0)
    return out.reshape(B, S, D)


if __name__ == "__main__":
    # Shapes from the module config: batch=3, seq_len=7, n_embd=8 -> hidden=32,
    # num_experts=5, k=2.
    B, S, D, H, E = 3, 7, 8, 32, 5

    key = jax.random.PRNGKey(0)
    keys = jax.random.split(key, 8)
    x = jax.random.normal(keys[0], (B, S, D), jnp.float32)

    # Deterministic synthetic parameters (noise_weight is zeros -> noise omitted).
    wg = jax.random.normal(keys[1], (D, E), jnp.float32) * 0.5   # gate_linear.weight^T
    w1 = jax.random.normal(keys[2], (D, H), jnp.float32) * 0.2   # ln_1.weight^T
    b1 = jax.random.normal(keys[3], (1, H), jnp.float32) * 0.1   # ln_1.bias
    w2 = jax.random.normal(keys[4], (D, H), jnp.float32) * 0.2   # ln_2.weight^T
    b2 = jax.random.normal(keys[5], (1, H), jnp.float32) * 0.1   # ln_2.bias
    wc = jax.random.normal(keys[6], (H, D), jnp.float32) * 0.2   # c_proj.weight^T
    bc = jax.random.normal(keys[7], (1, D), jnp.float32) * 0.1   # c_proj.bias
    params = (wg, w1, b1, w2, b2, wc, bc)

    out = moe_layer_forward(x, params)
    jax.block_until_ready(out)

    ref = reference(x, params)
    assert jnp.allclose(out, ref, atol=2e-3, rtol=2e-3), "mismatch vs reference"

    print("KERNEL_OK")
</pallas_src>

<mosaic_0001>
module attributes {stable_mosaic.version = 11 : i64} {
  func.func @moe_expert0_kernel(%arg0: i32, %arg1: memref<16x8xf32, #tpu.memory_space<vmem>>, %arg2: memref<8x384xbf16, #tpu.memory_space<vmem>>, %arg3: memref<1x384xf32, #tpu.memory_space<vmem>>, %arg4: memref<128x8xbf16, #tpu.memory_space<vmem>>, %arg5: memref<1x8xf32, #tpu.memory_space<vmem>>, %arg6: memref<16x8xf32, #tpu.memory_space<vmem>>) attributes {dimension_semantics = [#tpu.dimension_semantics<parallel>], iteration_bounds = array<i64: 2>, scalar_prefetch = 0 : i64, scratch_operands = 0 : i64, tpu.core_type = #tpu.core_type<tc>, window_params = [{transform_indices = @transform_0, window_bounds = array<i64: 16, 8>}, {pipeline_mode = #tpu.pipeline_mode<synchronous>, transform_indices = @transform_1, window_bounds = array<i64: 8, 384>}, {pipeline_mode = #tpu.pipeline_mode<synchronous>, transform_indices = @transform_2, window_bounds = array<i64: 1, 384>}, {pipeline_mode = #tpu.pipeline_mode<synchronous>, transform_indices = @transform_3, window_bounds = array<i64: 128, 8>}, {pipeline_mode = #tpu.pipeline_mode<synchronous>, transform_indices = @transform_4, window_bounds = array<i64: 1, 8>}, {transform_indices = @transform_5, window_bounds = array<i64: 16, 8>}]} {
    %c0 = arith.constant 0 : index
    %c0_0 = arith.constant 0 : index
    %0 = vector.load %arg1[%c0, %c0_0] : memref<16x8xf32, #tpu.memory_space<vmem>>, vector<16x8xf32>
    %1 = arith.truncf %0 : vector<16x8xf32> to vector<16x8xbf16>
    %c0_1 = arith.constant 0 : index
    %c0_2 = arith.constant 0 : index
    %2 = vector.load %arg2[%c0_1, %c0_2] : memref<8x384xbf16, #tpu.memory_space<vmem>>, vector<8x384xbf16>
    %cst = arith.constant dense<0.000000e+00> : vector<16x384xf32>
    %3 = tpu.matmul %1, %2, %cst {dimension_numbers = #tpu.dot_dimension_numbers<[1], [0], [0], [1], [0, 0, 1, 1], [], []>} : vector<16x8xbf16>, vector<8x384xbf16>, vector<16x384xf32> -> vector<16x384xf32>
    %c0_3 = arith.constant 0 : index
    %c0_4 = arith.constant 0 : index
    %4 = vector.load %arg3[%c0_3, %c0_4] : memref<1x384xf32, #tpu.memory_space<vmem>>, vector<1x384xf32>
    %5 = vector.broadcast %4 : vector<1x384xf32> to vector<16x384xf32>
    %6 = arith.addf %3, %5 : vector<16x384xf32>
    %7 = vector.extract_strided_slice %6 {offsets = [0, 0], sizes = [16, 128], strides = [1, 1]} : vector<16x384xf32> to vector<16x128xf32>
    %8 = vector.extract_strided_slice %6 {offsets = [0, 128], sizes = [16, 128], strides = [1, 1]} : vector<16x384xf32> to vector<16x128xf32>
    %9 = vector.extract_strided_slice %6 {offsets = [0, 256], sizes = [16, 128], strides = [1, 1]} : vector<16x384xf32> to vector<16x128xf32>
    %10 = tpu.iota {dimensions = array<i32: 1>} : vector<16x128xi32>
    %c5_i32 = arith.constant 5 : i32
    %11 = vector.broadcast %c5_i32 : i32 to vector<16x128xi32>
    %12 = arith.cmpi slt, %10, %11 : vector<16x128xi32>
    %cst_5 = arith.constant -1.000000e+30 : f32
    %13 = vector.broadcast %cst_5 : f32 to vector<16x128xf32>
    %14 = arith.select %12, %7, %13 : vector<16x128xi1>, vector<16x128xf32>
    %15 = vector.extract_strided_slice %14 {offsets = [0, 0], sizes = [16, 1], strides = [1, 1]} : vector<16x128xf32> to vector<16x1xf32>
    %c1_i32 = arith.constant 1 : i32
    %16 = vector.broadcast %c1_i32 : i32 to vector<16x128xi32>
    %17 = arith.cmpi sge, %10, %16 : vector<16x128xi32>
    %cst_6 = arith.constant -1.000000e+30 : f32
    %18 = vector.broadcast %cst_6 : f32 to vector<16x128xf32>
    %19 = arith.select %17, %14, %18 : vector<16x128xi1>, vector<16x128xf32>
    %cst_7 = arith.constant dense<0xFF800000> : vector<16xf32>
    %20 = vector.multi_reduction <maximumf>, %19, %cst_7 [1] : vector<16x128xf32> to vector<16xf32>
    %21 = vector.shape_cast %20 : vector<16xf32> to vector<16x1xf32>
    %22 = vector.broadcast %15 : vector<16x1xf32> to vector<16x128xf32>
    %23 = arith.cmpf ogt, %19, %22 : vector<16x128xf32>
    %24 = arith.extui %23 : vector<16x128xi1> to vector<16x128xi32>
    %cst_8 = arith.constant dense<0> : vector<16xi32>
    %25 = vector.multi_reduction <add>, %24, %cst_8 [1] : vector<16x128xi32> to vector<16xi32>
    %26 = vector.shape_cast %25 : vector<16xi32> to vector<16x1xi32>
    %c1_i32_9 = arith.constant 1 : i32
    %27 = vector.broadcast %c1_i32_9 : i32 to vector<16x1xi32>
    %28 = arith.cmpi sle, %26, %27 : vector<16x1xi32>
    %29 = arith.subf %15, %21 : vector<16x1xf32>
    %30 = arith.negf %29 : vector<16x1xf32>
    %31 = math.exp %30 : vector<16x1xf32>
    %cst_10 = arith.constant 1.000000e+00 : f32
    %32 = vector.broadcast %cst_10 : f32 to vector<16x1xf32>
    %33 = arith.addf %32, %31 : vector<16x1xf32>
    %34 = arith.divf %32, %33 : vector<16x1xf32>
    %cst_11 = arith.constant 0.000000e+00 : f32
    %35 = vector.broadcast %cst_11 : f32 to vector<16x1xf32>
    %36 = arith.select %28, %34, %35 : vector<16x1xi1>, vector<16x1xf32>
    %37 = arith.negf %9 : vector<16x128xf32>
    %38 = math.exp %37 : vector<16x128xf32>
    %cst_12 = arith.constant 1.000000e+00 : f32
    %39 = vector.broadcast %cst_12 : f32 to vector<16x128xf32>
    %40 = arith.addf %39, %38 : vector<16x128xf32>
    %41 = arith.divf %39, %40 : vector<16x128xf32>
    %42 = arith.mulf %9, %41 : vector<16x128xf32>
    %43 = arith.mulf %8, %42 : vector<16x128xf32>
    %44 = arith.truncf %43 : vector<16x128xf32> to vector<16x128xbf16>
    %c0_13 = arith.constant 0 : index
    %c0_14 = arith.constant 0 : index
    %45 = vector.load %arg4[%c0_13, %c0_14] : memref<128x8xbf16, #tpu.memory_space<vmem>>, vector<128x8xbf16>
    %cst_15 = arith.constant dense<0.000000e+00> : vector<16x8xf32>
    %46 = tpu.matmul %44, %45, %cst_15 {dimension_numbers = #tpu.dot_dimension_numbers<[1], [0], [0], [1], [0, 0, 1, 1], [], []>} : vector<16x128xbf16>, vector<128x8xbf16>, vector<16x8xf32> -> vector<16x8xf32>
    %c0_16 = arith.constant 0 : index
    %c0_17 = arith.constant 0 : index
    %47 = vector.load %arg5[%c0_16, %c0_17] : memref<1x8xf32, #tpu.memory_space<vmem>>, vector<1x8xf32>
    %48 = vector.broadcast %47 : vector<1x8xf32> to vector<16x8xf32>
    %49 = arith.addf %46, %48 : vector<16x8xf32>
    %50 = vector.broadcast %36 : vector<16x1xf32> to vector<16x8xf32>
    %51 = arith.mulf %50, %49 : vector<16x8xf32>
    %c0_18 = arith.constant 0 : index
    %c0_19 = arith.constant 0 : index
    %52 = vector.load %arg6[%c0_18, %c0_19] : memref<16x8xf32, #tpu.memory_space<vmem>>, vector<16x8xf32>
    tpu.vector_store %arg6[%c0_18, %c0_19], %51 {strides = array<i32>} : memref<16x8xf32, #tpu.memory_space<vmem>>, vector<16x8xf32>,
    return
  }
  func.func @transform_0(%arg0: i32) -> (i32, i32) {
    %c0_i32 = arith.constant 0 : i32
    %c0_i32_0 = arith.constant 0 : i32
    return %arg0, %c0_i32 : i32, i32
  }
  func.func @transform_1(%arg0: i32) -> (i32, i32) {
    %c0_i32 = arith.constant 0 : i32
    %c0_i32_0 = arith.constant 0 : i32
    %c0_i32_1 = arith.constant 0 : i32
    return %c0_i32, %c0_i32_0 : i32, i32
  }
  func.func @transform_2(%arg0: i32) -> (i32, i32) {
    %c0_i32 = arith.constant 0 : i32
    %c0_i32_0 = arith.constant 0 : i32
    %c0_i32_1 = arith.constant 0 : i32
    return %c0_i32, %c0_i32_0 : i32, i32
  }
  func.func @transform_3(%arg0: i32) -> (i32, i32) {
    %c0_i32 = arith.constant 0 : i32
    %c0_i32_0 = arith.constant 0 : i32
    %c0_i32_1 = arith.constant 0 : i32
    return %c0_i32, %c0_i32_0 : i32, i32
  }
  func.func @transform_4(%arg0: i32) -> (i32, i32) {
    %c0_i32 = arith.constant 0 : i32
    %c0_i32_0 = arith.constant 0 : i32
    %c0_i32_1 = arith.constant 0 : i32
    return %c0_i32, %c0_i32_0 : i32, i32
  }
  func.func @transform_5(%arg0: i32) -> (i32, i32) {
    %c0_i32 = arith.constant 0 : i32
    %c0_i32_0 = arith.constant 0 : i32
    return %arg0, %c0_i32 : i32, i32
  }
}

</mosaic_0001>

<llo_original>
// kernel: tpu_custom_call.1
$region0: #{tpu_custom_call.1}
  #allocation0 [shape = 'u32[]', space=smem, size = 0x4, offset = 0x4, fixed_abs, tag = 'smem constant byte address 0x4 - core index']
  #allocation1 [shape = 'u32[144,128]{1,0:T(1,128)}', space=vmem, size = 0x12000, scoped, tag = 'internal scratch']
  %s0 = inlined_call_operand.vmem [shape: f32[32,8], index: 0, kind: input, shape index: {}]
  %s1 = inlined_call_operand.vmem [shape: bf16[8,384], index: 1, kind: input, shape index: {}]
  %s2 = inlined_call_operand.vmem [shape: f32[1,384], index: 2, kind: input, shape index: {}]
  %s3 = inlined_call_operand.vmem [shape: bf16[128,8], index: 3, kind: input, shape index: {}]
  %s4 = inlined_call_operand.vmem [shape: f32[1,8], index: 4, kind: input, shape index: {}]
  %s5 = inlined_call_operand.vmem [shape: f32[32,8], index: 5, kind: output, shape index: {}]
  %s6 = sld [smem:[#allocation0]]
  $region53: #{tpu_custom_call.1} parent=0
    _
  %s8 = ssub.s32 1, %s6
  %s9 = scalar_select 0, %s8, %s6
  loop: start=0, step=1, limit=4
  $region2: #{tpu_custom_call.1} parent=0 // loop_pre_header
    _
  $region3: #{tpu_custom_call.1} parent=0 // loop_header
    %s11 = sphi 0, %s15
    %p12 = scmp.ge.s32.totalorder %s11, 4
    %s21 = sphi 0, %s23
    %s24 = sphi 0, %s21
    %s25 = sphi 0, %s24
    %s41 = sphi 0, %s25
    %s45 = sphi 0, %s45
    %s47 = sphi 0, %s45
    %s48 = sphi 0, %s47
    %s62 = sphi 0, %s48
    %s66 = sphi 0, %s66
    %s68 = sphi 0, %s66
    %s69 = sphi 0, %s68
    %s83 = sphi 0, %s69
    %s87 = sphi 0, %s87
    %s89 = sphi 0, %s87
    %s90 = sphi 0, %s89
    %s104 = sphi 0, %s90
    %s108 = sphi 0, %s108
    %s110 = sphi 0, %s108
    %s111 = sphi 0, %s110
    %s125 = sphi 0, %s111
    %s131 = sphi 0, %s133
    %s134 = sphi 0, %s131
    %s135 = sphi 0, %s134
    %s151 = sphi 0, %s135
  $region4: #{tpu_custom_call.1} parent=0 // loop_header_branch
    %14 = sbr.rel (%p12) target = $region8
  $region5: #{tpu_custom_call.1} parent=0 // loop_body
    %s16 = ssub.s32 %s11, 1
    %s17 = ssub.s32 %s11, 2
    %s18 = sadd.s32 %s11, 1
    %s19 = ssub.s32 %s11, %s18
    %p20 = scmp.eq.s32.totalorder %s19, 0
    %s22 = sadd.s32 %s21, 1
    %s23 = scalar_select %p20, %s21, %s22
    %p26 = pneg %p20
    %p27 = scmp.eq.s32.totalorder %s11, 1
    %p28 = por %p26, %p27
    %p29 = scmp.ne.s32.totalorder %s21, %s24
    %p30 = scmp.eq.s32.totalorder %s11, 0
    %p31 = por %p29, %p30
    %p32 = scmp.ne.s32.totalorder %s21, %s24
    %p33 = scmp.eq.s32.totalorder %s16, 1
    %p34 = por %p32, %p33
    %p35 = scmp.ne.s32.totalorder %s24, %s25
    %p36 = scmp.eq.s32.totalorder %s16, 0
    %p37 = por %p35, %p36
    %p38 = scmp.ne.s32.totalorder %s24, %s25
    %p39 = scmp.eq.s32.totalorder %s17, 1
    %p40 = por %p38, %p39
    %p42 = scmp.ne.s32.totalorder %s25, %s41
    %p43 = scmp.eq.s32.totalorder %s17, 0
    %p44 = por %p42, %p43
    %s46 = sadd.s32 %s45, 1
    %p49 = scmp.eq.s32.totalorder %s11, 1
    %p50 = scmp.ne.s32.totalorder %s45, %s47
    %p51 = scmp.eq.s32.totalorder %s11, 0
    %p52 = por %p50, %p51
    %p53 = scmp.ne.s32.totalorder %s45, %s47
    %p54 = scmp.eq.s32.totalorder %s16, 1
    %p55 = por %p53, %p54
    %p56 = scmp.ne.s32.totalorder %s47, %s48
    %p57 = scmp.eq.s32.totalorder %s16, 0
    %p58 = por %p56, %p57
    %p59 = scmp.ne.s32.totalorder %s47, %s48
    %p60 = scmp.eq.s32.totalorder %s17, 1
    %p61 = por %p59, %p60
    %p63 = scmp.ne.s32.totalorder %s48, %s62
    %p64 = scmp.eq.s32.totalorder %s17, 0
    %p65 = por %p63, %p64
    %s67 = sadd.s32 %s66, 1
    %p70 = scmp.eq.s32.totalorder %s11, 1
    %p71 = scmp.ne.s32.totalorder %s66, %s68
    %p72 = scmp.eq.s32.totalorder %s11, 0
    %p73 = por %p71, %p72
    %p74 = scmp.ne.s32.totalorder %s66, %s68
    %p75 = scmp.eq.s32.totalorder %s16, 1
    %p76 = por %p74, %p75
    %p77 = scmp.ne.s32.totalorder %s68, %s69
    %p78 = scmp.eq.s32.totalorder %s16, 0
    %p79 = por %p77, %p78
    %p80 = scmp.ne.s32.totalorder %s68, %s69
    %p81 = scmp.eq.s32.totalorder %s17, 1
    %p82 = por %p80, %p81
    %p84 = scmp.ne.s32.totalorder %s69, %s83
    %p85 = scmp.eq.s32.totalorder %s17, 0
    %p86 = por %p84, %p85
    %s88 = sadd.s32 %s87, 1
    %p91 = scmp.eq.s32.totalorder %s11, 1
    %p92 = scmp.ne.s32.totalorder %s87, %s89
    %p93 = scmp.eq.s32.totalorder %s11, 0
    %p94 = por %p92, %p93
    %p95 = scmp.ne.s32.totalorder %s87, %s89
    %p96 = scmp.eq.s32.totalorder %s16, 1
    %p97 = por %p95, %p96
    %p98 = scmp.ne.s32.totalorder %s89, %s90
    %p99 = scmp.eq.s32.totalorder %s16, 0
    %p100 = por %p98, %p99
    %p101 = scmp.ne.s32.totalorder %s89, %s90
    %p102 = scmp.eq.s32.totalorder %s17, 1
    %p103 = por %p101, %p102
    %p105 = scmp.ne.s32.totalorder %s90, %s104
    %p106 = scmp.eq.s32.totalorder %s17, 0
    %p107 = por %p105, %p106
    %s109 = sadd.s32 %s108, 1
    %p112 = scmp.eq.s32.totalorder %s11, 1
    %p113 = scmp.ne.s32.totalorder %s108, %s110
    %p114 = scmp.eq.s32.totalorder %s11, 0
    %p115 = por %p113, %p114
    %p116 = scmp.ne.s32.totalorder %s108, %s110
    %p117 = scmp.eq.s32.totalorder %s16, 1
    %p118 = por %p116, %p117
    %p119 = scmp.ne.s32.totalorder %s110, %s111
    %p120 = scmp.eq.s32.totalorder %s16, 0
    %p121 = por %p119, %p120
    %p122 = scmp.ne.s32.totalorder %s110, %s111
    %p123 = scmp.eq.s32.totalorder %s17, 1
    %p124 = por %p122, %p123
    %p126 = scmp.ne.s32.totalorder %s111, %s125
    %p127 = scmp.eq.s32.totalorder %s17, 0
    %p128 = por %p126, %p127
    %s129 = ssub.s32 %s11, %s18
    %p130 = scmp.eq.s32.totalorder %s129, 0
    %s132 = sadd.s32 %s131, 1
    %s133 = scalar_select %p130, %s131, %s132
    %p136 = pneg %p130
    %p137 = scmp.eq.s32.totalorder %s11, 1
    %p138 = por %p136, %p137
    %p139 = scmp.ne.s32.totalorder %s131, %s134
    %p140 = scmp.eq.s32.totalorder %s11, 0
    %p141 = por %p139, %p140
    %p142 = scmp.ne.s32.totalorder %s131, %s134
    %p143 = scmp.eq.s32.totalorder %s16, 1
    %p144 = por %p142, %p143
    %p145 = scmp.ne.s32.totalorder %s134, %s135
    %p146 = scmp.eq.s32.totalorder %s16, 0
    %p147 = por %p145, %p146
    %p148 = scmp.ne.s32.totalorder %s134, %s135
    %p149 = scmp.eq.s32.totalorder %s17, 1
    %p150 = por %p148, %p149
    %p152 = scmp.ne.s32.totalorder %s135, %s151
    %p153 = scmp.eq.s32.totalorder %s17, 0
    %p154 = por %p152, %p153
    %p155 = scmp.le.s32.totalorder 1, %s11
    %p156 = scmp.lt.s32.totalorder %s11, 3
    %p157 = pnand %p155, %p156
    %p158 = pneg %p157
    // Predicated region
    $region9: #{tpu_custom_call.1} parent=5 // pred_check
      _
    $region10: #{tpu_custom_call.1} parent=5 // pred_check_branch
      %160 = sbr.rel (%p157) target = $region12
    $region11: #{tpu_custom_call.1} parent=5 // pred_region
      %s161 = ssub.s32 %s11, 1
      // Predicated region
      $region13: #{tpu_custom_call.1} parent=11 // pred_check
        %p162 = pneg %p58
      $region14: #{tpu_custom_call.1} parent=11 // pred_check_branch
        %164 = sbr.rel (%p162) target = $region16
      $region15: #{tpu_custom_call.1} parent=11 // pred_region
        _
      $region16: #{tpu_custom_call.1} parent=11 // pred_fallthru
        _
      // Predicated region
      $region17: #{tpu_custom_call.1} parent=11 // pred_check
        %p165 = pneg %p79
      $region18: #{tpu_custom_call.1} parent=11 // pred_check_branch
        %167 = sbr.rel (%p165) target = $region20
      $region19: #{tpu_custom_call.1} parent=11 // pred_region
        _
      $region20: #{tpu_custom_call.1} parent=11 // pred_fallthru
        _
      // Predicated region
      $region21: #{tpu_custom_call.1} parent=11 // pred_check
        %p168 = pneg %p100
      $region22: #{tpu_custom_call.1} parent=11 // pred_check_branch
        %170 = sbr.rel (%p168) target = $region24
      $region23: #{tpu_custom_call.1} parent=11 // pred_region
        _
      $region24: #{tpu_custom_call.1} parent=11 // pred_fallthru
        _
      // Predicated region
      $region25: #{tpu_custom_call.1} parent=11 // pred_check
        %p171 = pneg %p121
      $region26: #{tpu_custom_call.1} parent=11 // pred_check_branch
        %173 = sbr.rel (%p171) target = $region28
      $region27: #{tpu_custom_call.1} parent=11 // pred_region
        _
      $region28: #{tpu_custom_call.1} parent=11 // pred_fallthru
        _
    $region12: #{tpu_custom_call.1} parent=5 // pred_fallthru
      _
    %p174 = scmp.lt.s32.totalorder %s11, 2
    // Predicated region
    $region29: #{tpu_custom_call.1} parent=5 // pred_check
      %p175 = pneg %p174
    $region30: #{tpu_custom_call.1} parent=5 // pred_check_branch
      %177 = sbr.rel (%p175) target = $region32
    $region31: #{tpu_custom_call.1} parent=5 // pred_region
      // Predicated region
      $region33: #{tpu_custom_call.1} parent=31 // pred_check
        %p178 = pneg %p31
      $region34: #{tpu_custom_call.1} parent=31 // pred_check_branch
        %180 = sbr.rel (%p178) target = $region36
      $region35: #{tpu_custom_call.1} parent=31 // pred_region
        %s181 = smul.u32 2, %s11
        %p182 = scmp.lt.s32.totalorder %s181, 3
        %s183 = scalar_select %p182, %s181, 3
        %s184 = smul.addr %s183, 8
        %s185 = scalar_lea.vmem %s0, %s184
        %s186 = smul.u32 2, %s11
      $region36: #{tpu_custom_call.1} parent=31 // pred_fallthru
        _
    $region32: #{tpu_custom_call.1} parent=5 // pred_fallthru
      _
    %p187 = scmp.le.s32.totalorder 1, %s11
    %p188 = scmp.lt.s32.totalorder %s11, 3
    %p189 = pnand %p187, %p188
    %p190 = pneg %p189
    // Predicated region
    $region37: #{tpu_custom_call.1} parent=5 // pred_check
      _
    $region38: #{tpu_custom_call.1} parent=5 // pred_check_branch
      %192 = sbr.rel (%p189) target = $region40
    $region39: #{tpu_custom_call.1} parent=5 // pred_region
      %s193 = ssub.s32 %s11, 1
      %s194 = smul.u32 2, %s16
      %p195 = scmp.lt.s32.totalorder %s194, 3
      %s196 = scalar_select %p195, %s194, 3
      %s197 = smul.addr %s196, 8
      %s198 = scalar_lea.vmem %s0, %s197
      %p199 = pneg %p37
      %p200 = pneg %p34
      %p201 = pneg %p58
      %p202 = pneg %p55
      %p203 = pneg %p79
      %p204 = pneg %p76
      %p205 = pneg %p100
      %p206 = pneg %p97
      %p207 = pneg %p121
      %p208 = pneg %p118
      %p209 = pneg %p147
      %p210 = pneg %p144
      %s211 = smul.u32 2, %s16
      %p212 = scmp.lt.s32.totalorder %s211, 3
      %s213 = scalar_select %p212, %s211, 3
      %s214 = smul.addr %s213, 8
      %s215 = scalar_lea.vmem %s5, %s214
      %s216 = smul.u32 2, %s16
      %p217 = scmp.lt.s32.totalorder %s216, 3
      %s218 = scalar_select %p217, %s216, 3
      %s219 = smul.addr %s218, 8
      %s220 = scalar_lea.vmem %s0, %s219
      %s221 = smul.u32 2, %s16
      %s222 = smul.u32 2, %s16
      %p223 = scmp.lt.s32.totalorder %s222, 3
      %s224 = scalar_select %p223, %s222, 3
      %s225 = smul.addr %s224, 8
      %s226 = scalar_lea.vmem %s5, %s225
      %s227 = smul.u32 2, %s16
      %v229 = vld [vmem:[%s220] sm:$0xff]
      %v230 = vld [vmem:[%s220 + $0x8] sm:$0xff]
      %v231 = vpack.c.bf16 %v230, %v229
      %v232 = vld [vmem:[%s1] sm:$0xff]
      %v233 = vld [vmem:[%s1 + $0x8] sm:$0xf]
      %v234 = vld [vmem:[%s2] sm:$0x7]
      %v236 = vlaneseq
      %v237 = vshrl.u32 %v236, 7
      %v238 = vsub.s32 0, %v237
      %v239 = vrot.slane %v234, %v238
      %v240 = vlaneseq
      %v241 = vshrl.u32 %v240, 7
      %v242 = vsub.s32 1, %v241
      %v243 = vrot.slane %v234, %v242
      %v244 = vlaneseq
      %v245 = vshrl.u32 %v244, 7
      %v246 = vsub.s32 2, %v245
      %v247 = vrot.slane %v234, %v246
      %v253 = vunpack.c.l.b16 %v232
      %v254 = vunpack.c.h.b16 %v232
      %v255 = vunpack.c.l.b16 %v233
      %v256 = vpack.c.b16 %v253, %v253
      %v257 = vpack.c.b16 %v254, %v254
      %v258 = vpack.c.b16 %v255, %v255
      %vm259 = vcmask 64512
      %v261 = vsel %vm259, %v231, 0
      %vm263 = vcmask 1043456
      %v265 = vsel %vm263, %v256, 0
      %v268 = vsel %vm263, %v257, 0
      %v271 = vsel %vm263, %v258, 0
      %273 = vmatprep.subr.bf16.mxu0 0
      %274 = vmatpush1.bf16.msra.mxu0 0
      %275 = vmatprep.subr.bf16.mxu0 0
      %276 = vmatpush1.bf16.msra.mxu0 0
      %277 = vmatprep.subr.bf16.mxu0 0
      %278 = vmatpush1.bf16.msra.mxu0 0
      %279 = vmatprep.subr.bf16.mxu0 0
      %280 = vmatpush1.bf16.msra.mxu0 0
      %281 = vmatprep.subr.bf16.mxu0 0
      %282 = vmatpush1.bf16.msra.mxu0 0
      %283 = vmatprep.subr.bf16.mxu0 0
      %284 = vmatpush1.bf16.msra.mxu0 0
      %285 = vmatprep.subr.bf16.mxu0 0
      %286 = vmatpush1.bf16.msra.mxu0 0
      %287 = vmatprep.subr.bf16.mxu0 %v268
      %288 = vmatpush1.bf16.msra.mxu0 %v265
      %289 = vmatprep.subr.bf16.mxu0 0
      %290 = vmatpush2.bf16.msra.mxu0 0
      %291 = vmatprep.subr.bf16.mxu0 0
      %292 = vmatpush2.bf16.msra.mxu0 0
      %293 = vmatprep.subr.bf16.mxu0 0
      %294 = vmatpush2.bf16.msra.mxu0 0
      %295 = vmatprep.subr.bf16.mxu0 0
      %296 = vmatpush2.bf16.msra.mxu0 0
      %297 = vmatprep.subr.bf16.mxu0 0
      %298 = vmatpush2.bf16.msra.mxu0 0
      %299 = vmatprep.subr.bf16.mxu0 0
      %300 = vmatpush2.bf16.msra.mxu0 0
      %301 = vmatprep.subr.bf16.mxu0 0
      %302 = vmatpush2.bf16.msra.mxu0 0
      %303 = vmatprep.subr.bf16.mxu0 0
      %304 = vmatpush2.bf16.msra.mxu0 0
      %305 = vmatprep.mubr.bf16.mxu0 0
      %306 = vmatmul.mubr.bf16.gmra.mxu0 %v261
      %v307 = vpop.f32.mrf.mxu0
      %v308 = vadd.f32 %v239, %v307
      %v309 = vpop.f32.mrf.mxu0
      %v310 = vadd.f32 %v243, %v309
      %v311 = vpop.f32.mrf.mxu0
      %v312 = vadd.f32 %v239, %v311
      %v313 = vpop.f32.mrf.mxu0
      %v314 = vadd.f32 %v243, %v313
      %315 = vdwg.mxu0
      %316 = vmatprep.subr.bf16.mxu0 0
      %317 = vmatpush1.bf16.msra.mxu0 0
      %318 = vmatprep.subr.bf16.mxu0 0
      %319 = vmatpush1.bf16.msra.mxu0 0
      %320 = vmatprep.subr.bf16.mxu0 0
      %321 = vmatpush1.bf16.msra.mxu0 0
      %322 = vmatprep.subr.bf16.mxu0 0
      %323 = vmatpush1.bf16.msra.mxu0 0
      %324 = vmatprep.subr.bf16.mxu0 0
      %325 = vmatpush1.bf16.msra.mxu0 0
      %326 = vmatprep.subr.bf16.mxu0 0
      %327 = vmatpush1.bf16.msra.mxu0 0
      %328 = vmatprep.subr.bf16.mxu0 0
      %329 = vmatpush1.bf16.msra.mxu0 0
      %330 = vmatprep.subr.bf16.mxu0 0
      %331 = vmatpush1.bf16.msra.mxu0 %v271
      %332 = vmatprep.subr.bf16.mxu0 0
      %333 = vmatpush2.bf16.msra.mxu0 0
      %334 = vmatprep.subr.bf16.mxu0 0
      %335 = vmatpush2.bf16.msra.mxu0 0
      %336 = vmatprep.subr.bf16.mxu0 0
      %337 = vmatpush2.bf16.msra.mxu0 0
      %338 = vmatprep.subr.bf16.mxu0 0
      %339 = vmatpush2.bf16.msra.mxu0 0
      %340 = vmatprep.subr.bf16.mxu0 0
      %341 = vmatpush2.bf16.msra.mxu0 0
      %342 = vmatprep.subr.bf16.mxu0 0
      %343 = vmatpush2.bf16.msra.mxu0 0
      %344 = vmatprep.subr.bf16.mxu0 0
      %345 = vmatpush2.bf16.msra.mxu0 0
      %346 = vmatprep.subr.bf16.mxu0 0
      %347 = vmatpush2.bf16.msra.mxu0 0
      %348 = vmatprep.mubr.bf16.mxu0 0
      %349 = vmatmul.mubr.bf16.gmra.mxu0 %v261
      %v350 = vpop.f32.mrf.mxu0
      %v351 = vadd.f32 %v247, %v350
      %v352 = vpop.f32.mrf.mxu0
      %v353 = vpop.f32.mrf.mxu0
      %v354 = vadd.f32 %v247, %v353
      %v355 = vpop.f32.mrf.mxu0
      %356 = vdwg.mxu0
      %v357 = vlaneseq
      %v358 = vand.u32 %v357, 127
      %vm359 = vcmp.lt.s32.totalorder %v358, 5
      %v360 = vsel %vm359, %v308, -1e+30
      %v361 = vsel %vm359, %v312, -1e+30
      %vm362 = vcmp.ge.s32.totalorder %v358, 1
      %v363 = vsel %vm362, %v360, -1e+30
      %v364 = vsel %vm362, %v361, -1e+30
      %365 = vmax.xlane.f32.xlu0 %v363
      %v366 = vpop.xlane.xlu0 %365
      %367 = vmax.xlane.f32.xlu0 %v364
      %v368 = vpop.xlane.xlu0 %367
      %370 = vset.pattern.permute.xlu0 0
      %371 = vperm.xlu0 %370, %v360
      %v372 = vpop.permute.xlu0 %371
      %375 = vset.pattern.permute.xlu0 0
      %376 = vperm.xlu0 %375, %v361
      %v377 = vpop.permute.xlu0 %376
      %vm379 = vcmp.gt.f32.partialorder %v363, %v372
      %vm380 = vcmp.gt.f32.partialorder %v364, %v377
      %v381 = vsel %vm379, 1, 0
      %v382 = vsel %vm380, 1, 0
      %v383 = vand.u32 %v381, 65535
      %v384 = vshrl.u32 %v381, 16
      %v385 = vcvt.s32.f32 %v383
      %v386 = vcvt.s32.f32 %v384
      %387 = vadd.xlane.f32.xlu0 %v385
      %v388 = vpop.xlane.xlu0 %387
      %389 = vadd.xlane.f32.xlu0 %v386
      %v390 = vpop.xlane.xlu0 %389
      %v391 = vcvt.f32.s32 %v388
      %v392 = vcvt.f32.s32 %v390
      %v393 = vshll.u32 %v392, 16
      %v394 = vadd.s32 %v393, %v391
      %v395 = vand.u32 %v382, 65535
      %v396 = vshrl.u32 %v382, 16
      %v397 = vcvt.s32.f32 %v395
      %v398 = vcvt.s32.f32 %v396
      %399 = vadd.xlane.f32.xlu0 %v397
      %v400 = vpop.xlane.xlu0 %399
      %401 = vadd.xlane.f32.xlu0 %v398
      %v402 = vpop.xlane.xlu0 %401
      %v403 = vcvt.f32.s32 %v400
      %v404 = vcvt.f32.s32 %v402
      %v405 = vshll.u32 %v404, 16
      %v406 = vadd.s32 %v405, %v403
      %vm407 = vcmp.le.s32.totalorder %v394, 1
      %vm408 = vcmp.le.s32.totalorder %v406, 1
      %v409 = vsub.f32 %v360, %v366
      %v410 = vsub.f32 %v361, %v368
      %v411 = vxor.u32 %v409, 2147483648
      %v412 = vxor.u32 %v410, 2147483648
      %v413 = vmul.f32 %v411, 1.442695
      %v414 = vpow.pop %v413
      %v415 = vmul.f32 %v412, 1.442695
      %v416 = vpow.pop %v415
      %v417 = vadd.f32 %v414, 1.0
      %v418 = vadd.f32 %v416, 1.0
      %v419 = vrcp.pop %v417
      %v420 = vmul.f32 1.0, %v419
      %v421 = vrcp.pop %v418
      %v422 = vmul.f32 1.0, %v421
      %v423 = vsel %vm407, %v420, 0.0
      %v424 = vsel %vm408, %v422, 0.0
      %v425 = vxor.u32 %v351, 2147483648
      %v426 = vxor.u32 %v354, 2147483648
      %v427 = vmul.f32 %v425, 1.442695
      %v428 = vpow.pop %v427
      %v429 = vmul.f32 %v426, 1.442695
      %v430 = vpow.pop %v429
      %v431 = vadd.f32 %v428, 1.0
      %v432 = vadd.f32 %v430, 1.0
      %v433 = vrcp.pop %v431
      %v434 = vmul.f32 1.0, %v433
      %v435 = vrcp.pop %v432
      %v436 = vmul.f32 1.0, %v435
      %v437 = vmul.f32 %v351, %v434
      %v438 = vmul.f32 %v354, %v436
      %v439 = vmul.f32 %v310, %v437
      %v440 = vmul.f32 %v314, %v438
      %v441 = vpack.c.bf16 %v440, %v439
      %v442 = vld [vmem:[%s3] sm:$0xf]
      %v443 = vld [vmem:[%s3 + $0x4] sm:$0xf]
      %v444 = vld [vmem:[%s3 + $0x8] sm:$0xf]
      %v445 = vld [vmem:[%s3 + $0xc] sm:$0xf]
      %v446 = vld [vmem:[%s3 + $0x10] sm:$0xf]
      %v447 = vld [vmem:[%s3 + $0x14] sm:$0xf]
      %v448 = vld [vmem:[%s3 + $0x18] sm:$0xf]
      %v449 = vld [vmem:[%s3 + $0x1c] sm:$0xf]
      %v450 = vld [vmem:[%s3 + $0x20] sm:$0xf]
      %v451 = vld [vmem:[%s3 + $0x24] sm:$0xf]
      %v452 = vld [vmem:[%s3 + $0x28] sm:$0xf]
      %v453 = vld [vmem:[%s3 + $0x2c] sm:$0xf]
      %v454 = vld [vmem:[%s3 + $0x30] sm:$0xf]
      %v455 = vld [vmem:[%s3 + $0x34] sm:$0xf]
      %v456 = vld [vmem:[%s3 + $0x38] sm:$0xf]
      %v457 = vld [vmem:[%s3 + $0x3c] sm:$0xf]
      %v458 = vld [vmem:[%s4] sm:$0x1]
      %v460 = vlaneseq
      %v461 = vshrl.u32 %v460, 7
      %v462 = vsub.s32 0, %v461
      %v463 = vrot.slane %v458, %v462
      %v481 = vunpack.c.l.b16 %v442
      %v482 = vunpack.c.l.b16 %v443
      %v483 = vunpack.c.l.b16 %v444
      %v484 = vunpack.c.l.b16 %v445
      %v485 = vunpack.c.l.b16 %v446
      %v486 = vunpack.c.l.b16 %v447
      %v487 = vunpack.c.l.b16 %v448
      %v488 = vunpack.c.l.b16 %v449
      %v489 = vunpack.c.l.b16 %v450
      %v490 = vunpack.c.l.b16 %v451
      %v491 = vunpack.c.l.b16 %v452
      %v492 = vunpack.c.l.b16 %v453
      %v493 = vunpack.c.l.b16 %v454
      %v494 = vunpack.c.l.b16 %v455
      %v495 = vunpack.c.l.b16 %v456
      %v496 = vunpack.c.l.b16 %v457
      %v497 = vpack.c.b16 %v482, %v481
      %v498 = vpack.c.b16 %v484, %v483
      %v499 = vpack.c.b16 %v486, %v485
      %v500 = vpack.c.b16 %v488, %v487
      %v501 = vpack.c.b16 %v490, %v489
      %v502 = vpack.c.b16 %v492, %v491
      %v503 = vpack.c.b16 %v494, %v493
      %v504 = vpack.c.b16 %v496, %v495
      %513 = vmatprep.subr.bf16.mxu0 0
      %514 = vmatpush1.bf16.msra.mxu0 %v504
      %515 = vmatprep.subr.bf16.mxu0 0
      %516 = vmatpush1.bf16.msra.mxu0 %v503
      %517 = vmatprep.subr.bf16.mxu0 0
      %518 = vmatpush1.bf16.msra.mxu0 %v502
      %519 = vmatprep.subr.bf16.mxu0 0
      %520 = vmatpush1.bf16.msra.mxu0 %v501
      %521 = vmatprep.subr.bf16.mxu0 0
      %522 = vmatpush1.bf16.msra.mxu0 %v500
      %523 = vmatprep.subr.bf16.mxu0 0
      %524 = vmatpush1.bf16.msra.mxu0 %v499
      %525 = vmatprep.subr.bf16.mxu0 0
      %526 = vmatpush1.bf16.msra.mxu0 %v498
      %527 = vmatprep.subr.bf16.mxu0 0
      %528 = vmatpush1.bf16.msra.mxu0 %v497
      %529 = vmatprep.subr.bf16.mxu0 0
      %530 = vmatpush2.bf16.msra.mxu0 0
      %531 = vmatprep.subr.bf16.mxu0 0
      %532 = vmatpush2.bf16.msra.mxu0 0
      %533 = vmatprep.subr.bf16.mxu0 0
      %534 = vmatpush2.bf16.msra.mxu0 0
      %535 = vmatprep.subr.bf16.mxu0 0
      %536 = vmatpush2.bf16.msra.mxu0 0
      %537 = vmatprep.subr.bf16.mxu0 0
      %538 = vmatpush2.bf16.msra.mxu0 0
      %539 = vmatprep.subr.bf16.mxu0 0
      %540 = vmatpush2.bf16.msra.mxu0 0
      %541 = vmatprep.subr.bf16.mxu0 0
      %542 = vmatpush2.bf16.msra.mxu0 0
      %543 = vmatprep.subr.bf16.mxu0 0
      %544 = vmatpush2.bf16.msra.mxu0 0
      %545 = vmatprep.mubr.bf16.mxu0 0
      %546 = vmatmul.mubr.bf16.gmra.mxu0 %v441
      %v547 = vpop.f32.mrf.mxu0
      %v548 = vadd.f32 %v463, %v547
      %v549 = vpop.f32.mrf.mxu0
      %v550 = vpop.f32.mrf.mxu0
      %v551 = vadd.f32 %v463, %v550
      %v552 = vpop.f32.mrf.mxu0
      %553 = vdwg.mxu0
      %555 = vset.pattern.permute.xlu0 0
      %556 = vperm.xlu0 %555, %v423
      %v557 = vpop.permute.xlu0 %556
      %560 = vset.pattern.permute.xlu0 0
      %561 = vperm.xlu0 %560, %v424
      %v562 = vpop.permute.xlu0 %561
      %v564 = vmul.f32 %v557, %v548
      %v565 = vmul.f32 %v562, %v551
      %566 = vst.msk [vmem:[%s226] sm:$0xff] %vm259, %v564
      %567 = vst.msk [vmem:[%s226 + $0x8] sm:$0xff] %vm259, %v565
      %s568 = smul.u32 2, %s16
      %p569 = scmp.lt.s32.totalorder %s568, 3
      %s570 = scalar_select %p569, %s568, 3
      %s571 = smul.addr %s570, 8
      %s572 = scalar_lea.vmem %s5, %s571
      // Predicated region
      $region41: #{tpu_custom_call.1} parent=39 // pred_check
        %p573 = pneg %p144
      $region42: #{tpu_custom_call.1} parent=39 // pred_check_branch
        %575 = sbr.rel (%p573) target = $region44
      $region43: #{tpu_custom_call.1} parent=39 // pred_region
        %s576 = smul.u32 2, %s16
      $region44: #{tpu_custom_call.1} parent=39 // pred_fallthru
        _
    $region40: #{tpu_custom_call.1} parent=5 // pred_fallthru
      _
    %p577 = scmp.le.s32.totalorder 2, %s11
    // Predicated region
    $region45: #{tpu_custom_call.1} parent=5 // pred_check
      %p578 = pneg %p577
    $region46: #{tpu_custom_call.1} parent=5 // pred_check_branch
      %580 = sbr.rel (%p578) target = $region48
    $region47: #{tpu_custom_call.1} parent=5 // pred_region
      %s581 = ssub.s32 %s11, 2
      // Predicated region
      $region49: #{tpu_custom_call.1} parent=47 // pred_check
        %p582 = pneg %p150
      $region50: #{tpu_custom_call.1} parent=47 // pred_check_branch
        %584 = sbr.rel (%p582) target = $region52
      $region51: #{tpu_custom_call.1} parent=47 // pred_region
        %s585 = smul.u32 2, %s17
        %p586 = scmp.lt.s32.totalorder %s585, 3
        %s587 = scalar_select %p586, %s585, 3
        %s588 = smul.addr %s587, 8
        %s589 = scalar_lea.vmem %s5, %s588
      $region52: #{tpu_custom_call.1} parent=47 // pred_fallthru
        _
    $region48: #{tpu_custom_call.1} parent=5 // pred_fallthru
      _
  $region6: #{tpu_custom_call.1} parent=0 // loop_footer
    %s15 = sadd.s32 1, %s11
  $region7: #{tpu_custom_call.1} parent=0 // loop_footer_branch
    %10 = sbr.rel target = $region3
  $region8: #{tpu_custom_call.1} parent=0 // loop_exit
    _

</llo_original>
